<compile_context>
chip_gen: v5e
topology: v5e:2x2
jax: 0.10.0
libtpu: 0.0.40
codegen_flags: <defaults>
</compile_context>

<pallas_src>
import functools

import jax
import jax.numpy as jnp
from jax.experimental import pallas as pl
from jax.experimental.pallas import tpu as pltpu

EPS = 1e-5
MOMENTUM = 0.9

_MiB = 1024 * 1024
_TILE_BYTES_TARGET = 4 * _MiB        # per x tile (native dtype), streaming path


def _vmem_limit_bytes():
    """Scoped-VMEM limit: 3/4 of physical capacity, capped at 64 MiB."""
    try:
        cap = pltpu.get_tpu_info().vmem_capacity_bytes
    except Exception:  # conservative default if the query is unavailable
        cap = 128 * _MiB
    return int(min(cap * 3 // 4, 64 * _MiB))


def _fast_path_budget_bytes(vmem_limit):
    # f32 bytes of one x channel-slab such that double-buffered x + y plus
    # the in-kernel f32 temporaries stay well under the scoped-VMEM limit.
    return min(vmem_limit // 8, 4 * _MiB)


def _largest_aligned_divisor(dim, align, cap):
    """Largest multiple of `align` that divides `dim` and is <= cap (or None)."""
    cap = min(cap, dim)
    t = (cap // align) * align
    while t >= align:
        if dim % t == 0:
            return t
        t -= align
    return None


def _largest_divisor(dim, cap):
    cap = max(1, min(cap, dim))
    for t in range(cap, 0, -1):
        if dim % t == 0:
            return t
    return 1


# ---------------------------------------------------------------------------
# Kernels
# ---------------------------------------------------------------------------

def _fast4d_kernel(x_ref, g_ref, b_ref, mm_ref, mv_ref,
                   y_ref, nmean_ref, nvar_ref, *, inv_count, momentum, eps):
    """Whole (N, TC, HW) channel slab resident in VMEM: one read, one write."""
    x = x_ref[...].astype(jnp.float32)                       # (N, TC, HW)
    s = jnp.sum(jnp.sum(x, axis=2, keepdims=True), axis=0, keepdims=True)
    q = jnp.sum(jnp.sum(x * x, axis=2, keepdims=True), axis=0, keepdims=True)
    mean = s * inv_count                                     # (1, TC, 1)
    var = jnp.maximum(q * inv_count - mean * mean, 0.0)      # clamp cancellation
    inv_std = jax.lax.rsqrt(var + eps)                       # EUP
    scale = g_ref[...].astype(jnp.float32) * inv_std
    shift = b_ref[...].astype(jnp.float32) - mean * scale
    y_ref[...] = (x * scale + shift).astype(y_ref.dtype)
    nmean_ref[...] = (momentum * mm_ref[...].astype(jnp.float32)
                      + (1.0 - momentum) * mean).astype(nmean_ref.dtype)
    nvar_ref[...] = (momentum * mv_ref[...].astype(jnp.float32)
                     + (1.0 - momentum) * var).astype(nvar_ref.dtype)


def _fast2d_kernel(x_ref, g_ref, b_ref, mm_ref, mv_ref,
                   y_ref, nmean_ref, nvar_ref, *, inv_count, momentum, eps):
    x = x_ref[...].astype(jnp.float32)                       # (N, TC)
    s = jnp.sum(x, axis=0, keepdims=True)
    q = jnp.sum(x * x, axis=0, keepdims=True)
    mean = s * inv_count
    var = jnp.maximum(q * inv_count - mean * mean, 0.0)
    inv_std = jax.lax.rsqrt(var + eps)
    scale = g_ref[...].astype(jnp.float32) * inv_std
    shift = b_ref[...].astype(jnp.float32) - mean * scale
    y_ref[...] = (x * scale + shift).astype(y_ref.dtype)
    nmean_ref[...] = (momentum * mm_ref[...].astype(jnp.float32)
                      + (1.0 - momentum) * mean).astype(nmean_ref.dtype)
    nvar_ref[...] = (momentum * mv_ref[...].astype(jnp.float32)
                     + (1.0 - momentum) * var).astype(nvar_ref.dtype)


def _stats4d_kernel(x_ref, sum_ref, sq_ref):
    """Per-(n-block, channel) partial sum / sum-of-squares; accumulate over hw."""
    @pl.when(pl.program_id(2) == 0)
    def _():
        sum_ref[...] = jnp.zeros_like(sum_ref)
        sq_ref[...] = jnp.zeros_like(sq_ref)

    x = x_ref[...].astype(jnp.float32)                       # (TN, TC, THW)
    s = jnp.sum(x, axis=2, keepdims=True)                    # lane reduce (XLU)
    q = jnp.sum(x * x, axis=2, keepdims=True)
    sum_ref[...] += jnp.sum(s, axis=0, keepdims=True)        # (1, TC, 1)
    sq_ref[...] += jnp.sum(q, axis=0, keepdims=True)


def _stats2d_kernel(x_ref, sum_ref, sq_ref):
    """Every grid point owns its output block -> no accumulation, all parallel."""
    x = x_ref[...].astype(jnp.float32)                       # (TN, TC)
    sum_ref[...] = jnp.sum(x, axis=0, keepdims=True)
    sq_ref[...] = jnp.sum(x * x, axis=0, keepdims=True)


def _norm_kernel(scale_ref, shift_ref, x_ref, y_ref):
    """y = x * scale + shift (single FMA per element, f32 math)."""
    y_ref[...] = (x_ref[...].astype(jnp.float32) * scale_ref[...]
                  + shift_ref[...]).astype(y_ref.dtype)


# ---------------------------------------------------------------------------
# 4-D (conv) path: x viewed as (N, C, H*W); lanes = H*W.
# ---------------------------------------------------------------------------

def _bn4d(x, gamma, beta, mmean, mvar, eps, momentum,
          force_streaming, tile_bytes):
    N, C, H, W = x.shape
    HW = H * W
    elem = jnp.dtype(x.dtype).itemsize
    vmem_limit = _vmem_limit_bytes()

    # Merging trailing dims / adding size-1 dims is layout-free (no HBM traffic).
    x3 = x.reshape(N, C, HW)
    g3 = gamma.reshape(1, C, 1)
    b3 = beta.reshape(1, C, 1)
    mm3 = mmean.reshape(1, C, 1)
    mv3 = mvar.reshape(1, C, 1)

    # ---------------- fast path: single pass, x read from HBM once ----------
    if not force_streaming:
        budget = _fast_path_budget_bytes(vmem_limit)
        slab_f32 = N * HW * 4
        if C * slab_f32 <= budget:
            tc_fast = C
        else:
            tc_fast = _largest_aligned_divisor(C, 8, budget // max(slab_f32, 1))
        if tc_fast is not None:
            x_spec = pl.BlockSpec((N, tc_fast, HW), lambda c: (0, c, 0))
            stat_spec = pl.BlockSpec((1, tc_fast, 1), lambda c: (0, c, 0))
            kern = functools.partial(_fast4d_kernel, inv_count=1.0 / (N * HW),
                                     momentum=momentum, eps=eps)
            y3, nm3, nv3 = pl.pallas_call(
                kern,
                grid=(C // tc_fast,),
                in_specs=[x_spec, stat_spec, stat_spec, stat_spec, stat_spec],
                out_specs=(x_spec, stat_spec, stat_spec),
                out_shape=(jax.ShapeDtypeStruct((N, C, HW), x.dtype),
                           jax.ShapeDtypeStruct((1, C, 1), mmean.dtype),
                           jax.ShapeDtypeStruct((1, C, 1), mvar.dtype)),
                compiler_params=pltpu.CompilerParams(
                    dimension_semantics=("parallel",),
                    vmem_limit_bytes=vmem_limit),
            )(x3, g3, b3, mm3, mv3)
            return (y3.reshape(N, C, H, W),
                    nm3.reshape(1, C, 1, 1),
                    nv3.reshape(1, C, 1, 1))

    # ---------------- streaming path: 2 reads + 1 write of x ----------------
    budget = tile_bytes
    thw_min = 128 if HW % 128 == 0 else HW
    tc = C
    if tc * thw_min * elem > budget:
        # shrink the channel (sublane) tile before emitting an oversized block
        tc = _largest_aligned_divisor(C, 8, max(8, budget // (thw_min * elem))) or C
    if HW * tc * elem <= budget:
        thw = HW
    elif HW % 128 == 0:
        thw = _largest_aligned_divisor(HW, 128,
                                       max(128, budget // (tc * elem))) or HW
    else:
        # TODO(synk): HW has no 128-multiple divisor; accept a full-HW lane
        # block (legal, may exceed the tile target for extreme spatial sizes).
        thw = HW
    tn = _largest_divisor(N, max(1, budget // max(tc * thw * elem, 1)))

    cb, nb, hwb = C // tc, N // tn, HW // thw
    grid = (cb, nb, hwb)
    x_spec = pl.BlockSpec((tn, tc, thw), lambda c, n, hw: (n, c, hw))
    psum_spec = pl.BlockSpec((1, tc, 1), lambda c, n, hw: (n, c, 0))

    # pass 1: per-(n-block, channel) partial sums; c and n parallel, hw reduces
    xsum_p, xsq_p = pl.pallas_call(
        _stats4d_kernel,
        grid=grid,
        in_specs=[x_spec],
        out_specs=(psum_spec, psum_spec),
        out_shape=(jax.ShapeDtypeStruct((nb, C, 1), jnp.float32),
                   jax.ShapeDtypeStruct((nb, C, 1), jnp.float32)),
        compiler_params=pltpu.CompilerParams(
            dimension_semantics=("parallel", "parallel", "arbitrary"),
            vmem_limit_bytes=vmem_limit),
    )(x3)

    # tiny (1, C) per-channel math in plain JAX (fused by XLA)
    inv_count = 1.0 / (N * HW)
    xsum = jnp.sum(xsum_p, axis=0, keepdims=True)            # (1, C, 1) f32
    xsq = jnp.sum(xsq_p, axis=0, keepdims=True)
    mean = xsum * inv_count
    var = jnp.maximum(xsq * inv_count - mean * mean, 0.0)
    inv_std = jax.lax.rsqrt(var + eps)
    scale = g3.astype(jnp.float32) * inv_std
    shift = b3.astype(jnp.float32) - mean * scale
    nmean = (momentum * mm3.astype(jnp.float32)
             + (1.0 - momentum) * mean).astype(mmean.dtype)
    nvar = (momentum * mv3.astype(jnp.float32)
            + (1.0 - momentum) * var).astype(mvar.dtype)

    # pass 2: normalize; disjoint output blocks -> ALL axes parallel (megacore)
    ss_spec = pl.BlockSpec((1, tc, 1), lambda c, n, hw: (0, c, 0))
    y3 = pl.pallas_call(
        _norm_kernel,
        grid=grid,
        in_specs=[ss_spec, ss_spec, x_spec],
        out_specs=x_spec,
        out_shape=jax.ShapeDtypeStruct((N, C, HW), x.dtype),
        compiler_params=pltpu.CompilerParams(
            dimension_semantics=("parallel", "parallel", "parallel"),
            vmem_limit_bytes=vmem_limit),
    )(scale, shift, x3)

    return (y3.reshape(N, C, H, W),
            nmean.reshape(1, C, 1, 1),
            nvar.reshape(1, C, 1, 1))


# ---------------------------------------------------------------------------
# 2-D (fully-connected) path: x is (N, C); lanes = C.
# ---------------------------------------------------------------------------

def _bn2d(x, gamma, beta, mmean, mvar, eps, momentum,
          force_streaming, tile_bytes):
    N, C = x.shape
    elem = jnp.dtype(x.dtype).itemsize
    vmem_limit = _vmem_limit_bytes()

    g2 = gamma.reshape(1, C)
    b2 = beta.reshape(1, C)
    mm2 = mmean.reshape(1, C)
    mv2 = mvar.reshape(1, C)

    # ---------------- fast path ----------------
    if not force_streaming:
        budget = _fast_path_budget_bytes(vmem_limit)
        col_f32 = N * 4
        if C * col_f32 <= budget:
            tc_fast = C
        else:
            tc_fast = _largest_aligned_divisor(C, 128, budget // max(col_f32, 1))
        if tc_fast is not None:
            x_spec = pl.BlockSpec((N, tc_fast), lambda c: (0, c))
            stat_spec = pl.BlockSpec((1, tc_fast), lambda c: (0, c))
            kern = functools.partial(_fast2d_kernel, inv_count=1.0 / N,
                                     momentum=momentum, eps=eps)
            y, nm, nv = pl.pallas_call(
                kern,
                grid=(C // tc_fast,),
                in_specs=[x_spec, stat_spec, stat_spec, stat_spec, stat_spec],
                out_specs=(x_spec, stat_spec, stat_spec),
                out_shape=(jax.ShapeDtypeStruct((N, C), x.dtype),
                           jax.ShapeDtypeStruct((1, C), mmean.dtype),
                           jax.ShapeDtypeStruct((1, C), mvar.dtype)),
                compiler_params=pltpu.CompilerParams(
                    dimension_semantics=("parallel",),
                    vmem_limit_bytes=vmem_limit),
            )(x, g2, b2, mm2, mv2)
            return y, nm, nv

    # ---------------- streaming path ----------------
    budget = tile_bytes
    # Lane-density fold: (N, C) -> (N//k, k*C) is layout-free; avoids masked
    # partial stores when C < 128.  Per-channel stats are folded back below.
    k = 1
    if C < 128:
        k = _largest_divisor(N, max(1, 512 // C))
    Nf, Cf = N // k, k * C
    xv = x.reshape(Nf, Cf)

    if Cf * 8 * elem <= budget or Cf % 128 != 0:
        tcf = Cf
    else:
        tcf = _largest_aligned_divisor(Cf, 128,
                                       max(128, budget // (8 * elem))) or Cf
    cap_tn = max(1, budget // max(tcf * elem, 1))
    if Nf <= cap_tn:
        tn = Nf
    else:
        tn = _largest_aligned_divisor(Nf, 8, cap_tn) or Nf

    cb, nb = Cf // tcf, Nf // tn
    grid = (cb, nb)
    x_spec = pl.BlockSpec((tn, tcf), lambda c, n: (n, c))
    psum_spec = pl.BlockSpec((1, tcf), lambda c, n: (n, c))
    cparams = pltpu.CompilerParams(
        dimension_semantics=("parallel", "parallel"),
        vmem_limit_bytes=vmem_limit)

    xsum_p, xsq_p = pl.pallas_call(
        _stats2d_kernel,
        grid=grid,
        in_specs=[x_spec],
        out_specs=(psum_spec, psum_spec),
        out_shape=(jax.ShapeDtypeStruct((nb, Cf), jnp.float32),
                   jax.ShapeDtypeStruct((nb, Cf), jnp.float32)),
        compiler_params=cparams,
    )(xv)

    # fold the k lane copies and the nb row-blocks back to per-channel stats
    inv_count = 1.0 / N
    xsum = jnp.sum(xsum_p.reshape(nb * k, C), axis=0, keepdims=True)   # (1, C)
    xsq = jnp.sum(xsq_p.reshape(nb * k, C), axis=0, keepdims=True)
    mean = xsum * inv_count
    var = jnp.maximum(xsq * inv_count - mean * mean, 0.0)
    inv_std = jax.lax.rsqrt(var + eps)
    scale = g2.astype(jnp.float32) * inv_std
    shift = b2.astype(jnp.float32) - mean * scale
    nmean = (momentum * mm2.astype(jnp.float32)
             + (1.0 - momentum) * mean).astype(mmean.dtype)
    nvar = (momentum * mv2.astype(jnp.float32)
            + (1.0 - momentum) * var).astype(mvar.dtype)

    scale_f = jnp.tile(scale, (1, k))                                  # (1, Cf)
    shift_f = jnp.tile(shift, (1, k))

    ss_spec = pl.BlockSpec((1, tcf), lambda c, n: (0, c))
    yv = pl.pallas_call(
        _norm_kernel,
        grid=grid,
        in_specs=[ss_spec, ss_spec, x_spec],
        out_specs=x_spec,
        out_shape=jax.ShapeDtypeStruct((Nf, Cf), x.dtype),
        compiler_params=cparams,
    )(scale_f, shift_f, xv)

    return yv.reshape(N, C), nmean, nvar


# ---------------------------------------------------------------------------
# Public wrapper (mirrors BatchNorm.forward, training path)
# ---------------------------------------------------------------------------

def batch_norm_forward(x, gamma, beta, moving_mean, moving_var,
                       eps=EPS, momentum=MOMENTUM, *,
                       force_streaming=False, tile_bytes_target=None):
    """x: (N, C) or (N, C, H, W) NCHW; params/stats: (1, C) or (1, C, 1, 1).

    Returns (Y, new_moving_mean, new_moving_var) with the input shapes.
    Uses biased (population) variance, matching the d2l `batch_norm`."""
    assert x.ndim in (2, 4)
    tile_bytes = _TILE_BYTES_TARGET if tile_bytes_target is None else tile_bytes_target
    if x.ndim == 2:
        return _bn2d(x, gamma, beta, moving_mean, moving_var, eps, momentum,
                     force_streaming, tile_bytes)
    return _bn4d(x, gamma, beta, moving_mean, moving_var, eps, momentum,
                 force_streaming, tile_bytes)


# ---------------------------------------------------------------------------
# Pure-JAX reference (training-mode path of the PyTorch code)
# ---------------------------------------------------------------------------

def _reference(x, gamma, beta, moving_mean, moving_var,
               eps=EPS, momentum=MOMENTUM):
    axes = (0,) if x.ndim == 2 else (0, 2, 3)
    mean = jnp.mean(x, axis=axes, keepdims=True)
    var = jnp.mean((x - mean) ** 2, axis=axes, keepdims=True)
    x_hat = (x - mean) / jnp.sqrt(var + eps)
    y = gamma * x_hat + beta
    nmean = momentum * moving_mean + (1.0 - momentum) * mean
    nvar = momentum * moving_var + (1.0 - momentum) * var
    return y, nmean, nvar


if __name__ == "__main__":
    key = jax.random.PRNGKey(0)
    k4, k2, k4b, k2b = jax.random.split(key, 4)

    def check(x, gamma, beta, mmean, mvar, **kw):
        out = batch_norm_forward(x, gamma, beta, mmean, mvar, **kw)
        jax.block_until_ready(out)
        ry, rnm, rnv = _reference(x, gamma, beta, mmean, mvar)
        y, nm, nv = out
        assert jnp.allclose(y, ry, atol=1e-5, rtol=1e-5), "Y mismatch"
        assert jnp.allclose(nm, rnm, atol=1e-6, rtol=1e-6), "moving_mean mismatch"
        assert jnp.allclose(nv, rnv, atol=1e-6, rtol=1e-6), "moving_var mismatch"

    # --- 4-D case (conv-layer batch norm), NCHW like the PyTorch module ---
    N, C, H, W = 2, 4, 16, 16
    x4 = jax.random.normal(k4, (N, C, H, W), jnp.float32)
    g4 = jnp.full((1, C, 1, 1), 1.5, jnp.float32)
    b4 = jnp.full((1, C, 1, 1), 0.25, jnp.float32)
    mm4 = jnp.zeros((1, C, 1, 1), jnp.float32)
    mv4 = jnp.ones((1, C, 1, 1), jnp.float32)
    check(x4, g4, b4, mm4, mv4)                                   # fast path
    check(x4, g4, b4, mm4, mv4, force_streaming=True)             # 2-pass path

    # --- 4-D streaming with a multi-block grid (exercises hw accumulation
    #     and per-n-block partial sums) ---
    Nb, Cb, Hb, Wb = 4, 8, 16, 16
    x4b = jax.random.normal(k4b, (Nb, Cb, Hb, Wb), jnp.float32)
    g4b = jnp.ones((1, Cb, 1, 1), jnp.float32)
    b4b = jnp.zeros((1, Cb, 1, 1), jnp.float32)
    mm4b = jnp.zeros((1, Cb, 1, 1), jnp.float32)
    mv4b = jnp.ones((1, Cb, 1, 1), jnp.float32)
    check(x4b, g4b, b4b, mm4b, mv4b,
          force_streaming=True, tile_bytes_target=4096)

    # --- 2-D case (fully-connected batch norm) ---
    N2, C2 = 8, 32
    x2 = jax.random.normal(k2, (N2, C2), jnp.float32)
    g2 = jnp.ones((1, C2), jnp.float32)
    b2 = jnp.zeros((1, C2), jnp.float32)
    mm2 = jnp.zeros((1, C2), jnp.float32)
    mv2 = jnp.ones((1, C2), jnp.float32)
    check(x2, g2, b2, mm2, mv2)                                   # fast path
    check(x2, g2, b2, mm2, mv2, force_streaming=True)             # folded 2-pass

    # --- 2-D streaming with lane folding and multiple channel blocks ---
    N2b, C2b = 64, 32
    x2b = jax.random.normal(k2b, (N2b, C2b), jnp.float32)
    g2b = jnp.full((1, C2b), 0.5, jnp.float32)
    b2b = jnp.full((1, C2b), -0.1, jnp.float32)
    mm2b = jnp.zeros((1, C2b), jnp.float32)
    mv2b = jnp.ones((1, C2b), jnp.float32)
    check(x2b, g2b, b2b, mm2b, mv2b,
          force_streaming=True, tile_bytes_target=2048)

    print("KERNEL_OK")
</pallas_src>

<mosaic_0001>
module attributes {stable_mosaic.version = 11 : i64} {
  func.func @_fast4d_kernel(%arg0: i32, %arg1: memref<2x4x256xf32, #tpu.memory_space<vmem>>, %arg2: memref<1x4x1xf32, #tpu.memory_space<vmem>>, %arg3: memref<1x4x1xf32, #tpu.memory_space<vmem>>, %arg4: memref<1x4x1xf32, #tpu.memory_space<vmem>>, %arg5: memref<1x4x1xf32, #tpu.memory_space<vmem>>, %arg6: memref<2x4x256xf32, #tpu.memory_space<vmem>>, %arg7: memref<1x4x1xf32, #tpu.memory_space<vmem>>, %arg8: memref<1x4x1xf32, #tpu.memory_space<vmem>>) attributes {dimension_semantics = [#tpu.dimension_semantics<parallel>], iteration_bounds = array<i64: 1>, scalar_prefetch = 0 : i64, scratch_operands = 0 : i64, tpu.core_type = #tpu.core_type<tc>, window_params = [{transform_indices = @transform_0, window_bounds = array<i64: 2, 4, 256>}, {transform_indices = @transform_1, window_bounds = array<i64: 1, 4, 1>}, {transform_indices = @transform_2, window_bounds = array<i64: 1, 4, 1>}, {transform_indices = @transform_3, window_bounds = array<i64: 1, 4, 1>}, {transform_indices = @transform_4, window_bounds = array<i64: 1, 4, 1>}, {transform_indices = @transform_5, window_bounds = array<i64: 2, 4, 256>}, {transform_indices = @transform_6, window_bounds = array<i64: 1, 4, 1>}, {transform_indices = @transform_7, window_bounds = array<i64: 1, 4, 1>}]} {
    %c0 = arith.constant 0 : index
    %c0_0 = arith.constant 0 : index
    %c0_1 = arith.constant 0 : index
    %0 = vector.load %arg1[%c0, %c0_0, %c0_1] : memref<2x4x256xf32, #tpu.memory_space<vmem>>, vector<2x4x256xf32>
    %cst = arith.constant dense<0.000000e+00> : vector<2x4xf32>
    %1 = vector.multi_reduction <add>, %0, %cst [2] : vector<2x4x256xf32> to vector<2x4xf32>
    %2 = vector.shape_cast %1 : vector<2x4xf32> to vector<2x4x1xf32>
    %cst_2 = arith.constant dense<0.000000e+00> : vector<4x1xf32>
    %3 = vector.multi_reduction <add>, %2, %cst_2 [0] : vector<2x4x1xf32> to vector<4x1xf32>
    %4 = vector.shape_cast %3 : vector<4x1xf32> to vector<1x4x1xf32>
    %5 = arith.mulf %0, %0 : vector<2x4x256xf32>
    %cst_3 = arith.constant dense<0.000000e+00> : vector<2x4xf32>
    %6 = vector.multi_reduction <add>, %5, %cst_3 [2] : vector<2x4x256xf32> to vector<2x4xf32>
    %7 = vector.shape_cast %6 : vector<2x4xf32> to vector<2x4x1xf32>
    %cst_4 = arith.constant dense<0.000000e+00> : vector<4x1xf32>
    %8 = vector.multi_reduction <add>, %7, %cst_4 [0] : vector<2x4x1xf32> to vector<4x1xf32>
    %9 = vector.shape_cast %8 : vector<4x1xf32> to vector<1x4x1xf32>
    %cst_5 = arith.constant 0.001953125 : f32
    %10 = vector.broadcast %cst_5 : f32 to vector<1x4x1xf32>
    %11 = arith.mulf %4, %10 : vector<1x4x1xf32>
    %cst_6 = arith.constant 0.001953125 : f32
    %12 = vector.broadcast %cst_6 : f32 to vector<1x4x1xf32>
    %13 = arith.mulf %9, %12 : vector<1x4x1xf32>
    %14 = arith.mulf %11, %11 : vector<1x4x1xf32>
    %15 = arith.subf %13, %14 : vector<1x4x1xf32>
    %cst_7 = arith.constant 0.000000e+00 : f32
    %16 = vector.broadcast %cst_7 : f32 to vector<1x4x1xf32>
    %17 = arith.maximumf %15, %16 : vector<1x4x1xf32>
    %cst_8 = arith.constant 9.99999974E-6 : f32
    %18 = vector.broadcast %cst_8 : f32 to vector<1x4x1xf32>
    %19 = arith.addf %17, %18 : vector<1x4x1xf32>
    %20 = math.rsqrt %19 : vector<1x4x1xf32>
    %c0_9 = arith.constant 0 : index
    %c0_10 = arith.constant 0 : index
    %c0_11 = arith.constant 0 : index
    %21 = vector.load %arg2[%c0_9, %c0_10, %c0_11] : memref<1x4x1xf32, #tpu.memory_space<vmem>>, vector<1x4x1xf32>
    %22 = arith.mulf %21, %20 : vector<1x4x1xf32>
    %c0_12 = arith.constant 0 : index
    %c0_13 = arith.constant 0 : index
    %c0_14 = arith.constant 0 : index
    %23 = vector.load %arg3[%c0_12, %c0_13, %c0_14] : memref<1x4x1xf32, #tpu.memory_space<vmem>>, vector<1x4x1xf32>
    %24 = arith.mulf %11, %22 : vector<1x4x1xf32>
    %25 = arith.subf %23, %24 : vector<1x4x1xf32>
    %26 = vector.broadcast %22 : vector<1x4x1xf32> to vector<2x4x256xf32>
    %27 = arith.mulf %0, %26 : vector<2x4x256xf32>
    %28 = vector.broadcast %25 : vector<1x4x1xf32> to vector<2x4x256xf32>
    %29 = arith.addf %27, %28 : vector<2x4x256xf32>
    %c0_15 = arith.constant 0 : index
    %c0_16 = arith.constant 0 : index
    %c0_17 = arith.constant 0 : index
    %30 = vector.load %arg6[%c0_15, %c0_16, %c0_17] : memref<2x4x256xf32, #tpu.memory_space<vmem>>, vector<2x4x256xf32>
    tpu.vector_store %arg6[%c0_15, %c0_16, %c0_17], %29 {strides = array<i32>} : memref<2x4x256xf32, #tpu.memory_space<vmem>>, vector<2x4x256xf32>,
    %c0_18 = arith.constant 0 : index
    %c0_19 = arith.constant 0 : index
    %c0_20 = arith.constant 0 : index
    %31 = vector.load %arg4[%c0_18, %c0_19, %c0_20] : memref<1x4x1xf32, #tpu.memory_space<vmem>>, vector<1x4x1xf32>
    %cst_21 = arith.constant 0.899999976 : f32
    %32 = vector.broadcast %cst_21 : f32 to vector<1x4x1xf32>
    %33 = arith.mulf %32, %31 : vector<1x4x1xf32>
    %cst_22 = arith.constant 1.000000e-01 : f32
    %34 = vector.broadcast %cst_22 : f32 to vector<1x4x1xf32>
    %35 = arith.mulf %34, %11 : vector<1x4x1xf32>
    %36 = arith.addf %33, %35 : vector<1x4x1xf32>
    %c0_23 = arith.constant 0 : index
    %c0_24 = arith.constant 0 : index
    %c0_25 = arith.constant 0 : index
    %37 = vector.load %arg7[%c0_23, %c0_24, %c0_25] : memref<1x4x1xf32, #tpu.memory_space<vmem>>, vector<1x4x1xf32>
    tpu.vector_store %arg7[%c0_23, %c0_24, %c0_25], %36 {strides = array<i32>} : memref<1x4x1xf32, #tpu.memory_space<vmem>>, vector<1x4x1xf32>,
    %c0_26 = arith.constant 0 : index
    %c0_27 = arith.constant 0 : index
    %c0_28 = arith.constant 0 : index
    %38 = vector.load %arg5[%c0_26, %c0_27, %c0_28] : memref<1x4x1xf32, #tpu.memory_space<vmem>>, vector<1x4x1xf32>
    %cst_29 = arith.constant 0.899999976 : f32
    %39 = vector.broadcast %cst_29 : f32 to vector<1x4x1xf32>
    %40 = arith.mulf %39, %38 : vector<1x4x1xf32>
    %cst_30 = arith.constant 1.000000e-01 : f32
    %41 = vector.broadcast %cst_30 : f32 to vector<1x4x1xf32>
    %42 = arith.mulf %41, %17 : vector<1x4x1xf32>
    %43 = arith.addf %40, %42 : vector<1x4x1xf32>
    %c0_31 = arith.constant 0 : index
    %c0_32 = arith.constant 0 : index
    %c0_33 = arith.constant 0 : index
    %44 = vector.load %arg8[%c0_31, %c0_32, %c0_33] : memref<1x4x1xf32, #tpu.memory_space<vmem>>, vector<1x4x1xf32>
    tpu.vector_store %arg8[%c0_31, %c0_32, %c0_33], %43 {strides = array<i32>} : memref<1x4x1xf32, #tpu.memory_space<vmem>>, vector<1x4x1xf32>,
    return
  }
  func.func @transform_0(%arg0: i32) -> (i32, i32, i32) {
    %c0_i32 = arith.constant 0 : i32
    %c0_i32_0 = arith.constant 0 : i32
    %c0_i32_1 = arith.constant 0 : i32
    return %c0_i32, %arg0, %c0_i32_0 : i32, i32, i32
  }
  func.func @transform_1(%arg0: i32) -> (i32, i32, i32) {
    %c0_i32 = arith.constant 0 : i32
    %c0_i32_0 = arith.constant 0 : i32
    %c0_i32_1 = arith.constant 0 : i32
    return %c0_i32, %arg0, %c0_i32_0 : i32, i32, i32
  }
  func.func @transform_2(%arg0: i32) -> (i32, i32, i32) {
    %c0_i32 = arith.constant 0 : i32
    %c0_i32_0 = arith.constant 0 : i32
    %c0_i32_1 = arith.constant 0 : i32
    return %c0_i32, %arg0, %c0_i32_0 : i32, i32, i32
  }
  func.func @transform_3(%arg0: i32) -> (i32, i32, i32) {
    %c0_i32 = arith.constant 0 : i32
    %c0_i32_0 = arith.constant 0 : i32
    %c0_i32_1 = arith.constant 0 : i32
    return %c0_i32, %arg0, %c0_i32_0 : i32, i32, i32
  }
  func.func @transform_4(%arg0: i32) -> (i32, i32, i32) {
    %c0_i32 = arith.constant 0 : i32
    %c0_i32_0 = arith.constant 0 : i32
    %c0_i32_1 = arith.constant 0 : i32
    return %c0_i32, %arg0, %c0_i32_0 : i32, i32, i32
  }
  func.func @transform_5(%arg0: i32) -> (i32, i32, i32) {
    %c0_i32 = arith.constant 0 : i32
    %c0_i32_0 = arith.constant 0 : i32
    %c0_i32_1 = arith.constant 0 : i32
    return %c0_i32, %arg0, %c0_i32_0 : i32, i32, i32
  }
  func.func @transform_6(%arg0: i32) -> (i32, i32, i32) {
    %c0_i32 = arith.constant 0 : i32
    %c0_i32_0 = arith.constant 0 : i32
    %c0_i32_1 = arith.constant 0 : i32
    return %c0_i32, %arg0, %c0_i32_0 : i32, i32, i32
  }
  func.func @transform_7(%arg0: i32) -> (i32, i32, i32) {
    %c0_i32 = arith.constant 0 : i32
    %c0_i32_0 = arith.constant 0 : i32
    %c0_i32_1 = arith.constant 0 : i32
    return %c0_i32, %arg0, %c0_i32_0 : i32, i32, i32
  }
}

</mosaic_0001>

<llo_original>
// kernel: tpu_custom_call.1
$region0: #{tpu_custom_call.1}
  #allocation0 [shape = 'u32[]', space=smem, size = 0x4, offset = 0x4, fixed_abs, tag = 'smem constant byte address 0x4 - core index']
  #allocation1 [shape = 'u32[72,128]{1,0:T(1,128)}', space=vmem, size = 0x9000, scoped, tag = 'internal scratch']
  %s0 = inlined_call_operand.hbm [shape: f32[2,4,256], index: 0, kind: input, shape index: {}]
  %s1 = inlined_call_operand.vmem [shape: f32[1,4,1], index: 1, kind: input, shape index: {}]
  %s2 = inlined_call_operand.vmem [shape: f32[1,4,1], index: 2, kind: input, shape index: {}]
  %s3 = inlined_call_operand.vmem [shape: f32[1,4,1], index: 3, kind: input, shape index: {}]
  %s4 = inlined_call_operand.vmem [shape: f32[1,4,1], index: 4, kind: input, shape index: {}]
  %s5 = inlined_call_operand.hbm [shape: f32[2,4,256], index: 5, kind: output, shape index: {0}]
  %s6 = inlined_call_operand.vmem [shape: f32[1,4,1], index: 6, kind: output, shape index: {1}]
  %s7 = inlined_call_operand.vmem [shape: f32[1,4,1], index: 7, kind: output, shape index: {2}]
  %8 = xla_tuple %s5, %s6, %s7
  %s9 = sld [smem:[#allocation0]]
  $region50: #{tpu_custom_call.1} parent=0
    _
  %s11 = ssub.s32 1, %s9
  %s12 = scalar_select 0, %s11, %s9
  $region1: #{tpu_custom_call.1} parent=0
    #allocation2 [shape = 'u8[8192]{0}', space=vmem, size = 0x2000, scoped, tag = 'input window, operand 0, single buffered']
    #allocation3 [shape = 's32[1]{0}', space=sflag, size = 0x4, scoped, tag = 'scoped memory for tpu_custom_call.1']
    #allocation4 [shape = 's32[1]{0}', space=sflag, size = 0x4, scoped, tag = 'scoped memory for tpu_custom_call.1']
    #allocation5 [shape = 'u8[8192]{0}', space=vmem, size = 0x2000, scoped, tag = 'output window, operand 0, single buffered']
    %13 = vsyncpa [#allocation3], 0
    %14 = vsyncpa [#allocation4], 0
    // Predicated region
    $region2: #{tpu_custom_call.1} parent=1 // pred_check
      _
    $region3: #{tpu_custom_call.1} parent=1 // pred_check_branch
      %16 = sbr.rel (0) target = $region5
    $region4: #{tpu_custom_call.1} parent=1 // pred_region
      %18 = vsyncadd [#allocation3], 0
      %s19 = sshll.u32 %s0, 4
      %s20 = int_to_ptr.hbm [resolvable:$true] %s19
      %s21 = sshll.u32 [#allocation2], 4
      %s22 = int_to_ptr.vmem [resolvable:$true] %s21
      %27 = dma.hbm_to_vmem [thread:$0]  %s20, 256, %s22, [#allocation3], 128, 128, 8
    $region5: #{tpu_custom_call.1} parent=1 // pred_fallthru
      _
    // Predicated region
    $region6: #{tpu_custom_call.1} parent=1 // pred_check
      _
    $region7: #{tpu_custom_call.1} parent=1 // pred_check_branch
      %29 = sbr.rel (0) target = $region9
    $region8: #{tpu_custom_call.1} parent=1 // pred_region
      _
    $region9: #{tpu_custom_call.1} parent=1 // pred_fallthru
      _
    // Predicated region
    $region10: #{tpu_custom_call.1} parent=1 // pred_check
      _
    $region11: #{tpu_custom_call.1} parent=1 // pred_check_branch
      %31 = sbr.rel (0) target = $region13
    $region12: #{tpu_custom_call.1} parent=1 // pred_region
      _
    $region13: #{tpu_custom_call.1} parent=1 // pred_fallthru
      _
    // Predicated region
    $region14: #{tpu_custom_call.1} parent=1 // pred_check
      _
    $region15: #{tpu_custom_call.1} parent=1 // pred_check_branch
      %33 = sbr.rel (0) target = $region17
    $region16: #{tpu_custom_call.1} parent=1 // pred_region
      _
    $region17: #{tpu_custom_call.1} parent=1 // pred_fallthru
      _
    // Predicated region
    $region18: #{tpu_custom_call.1} parent=1 // pred_check
      _
    $region19: #{tpu_custom_call.1} parent=1 // pred_check_branch
      %35 = sbr.rel (0) target = $region21
    $region20: #{tpu_custom_call.1} parent=1 // pred_region
      _
    $region21: #{tpu_custom_call.1} parent=1 // pred_fallthru
      _
    // Predicated region
    $region22: #{tpu_custom_call.1} parent=1 // pred_check
      _
    $region23: #{tpu_custom_call.1} parent=1 // pred_check_branch
      %37 = sbr.rel (0) target = $region25
    $region24: #{tpu_custom_call.1} parent=1 // pred_region
      %39 = dma.done [#allocation3], 256
    $region25: #{tpu_custom_call.1} parent=1 // pred_fallthru
      _
    %v40 = vld [vmem:[#allocation2] sm:$0xff]
    %v41 = vld [vmem:[#allocation2 + $0x8] sm:$0xff]
    %44 = vst [vmem:[#allocation1] ss:$2 sm:$0xff] %v40
    %v45 = vld.sshfl [vmem:[#allocation1] sm:$0xff pattern:$0x75316420]
    %v46 = vld.sshfl [vmem:[#allocation1 + $0x8] sm:$0xff pattern:$0x75316420]
    %s47 = scalar_lea.vmem [#allocation1], 16
    %48 = vst [vmem:[%s47] ss:$2 sm:$0xff] %v41
    %v49 = vld.sshfl [vmem:[#allocation1 + $0x10] sm:$0xff pattern:$0x75316420]
    %v50 = vld.sshfl [vmem:[#allocation1 + $0x18] sm:$0xff pattern:$0x75316420]
    %vm55 = vcmask 1043456
    %v56 = vsel %vm55, %v45, 0.0
    %v57 = vsel %vm55, %v46, 0.0
    %v58 = vadd.f32 %v56, %v57
    %59 = vadd.xlane.f32.xlu0 %v58
    %v60 = vpop.xlane.xlu0 %59
    %v61 = vsel %vm55, %v49, 0.0
    %v62 = vsel %vm55, %v50, 0.0
    %v63 = vadd.f32 %v61, %v62
    %64 = vadd.xlane.f32.xlu0 %v63
    %v65 = vpop.xlane.xlu0 %64
    %v66 = vsel %vm55, %v60, 0.0
    %v67 = vsel %vm55, %v65, 0.0
    %v68 = vadd.f32 %v66, %v67
    %v69 = vmul.f32 %v40, %v40
    %v70 = vmul.f32 %v41, %v41
    %73 = vst [vmem:[#allocation1] ss:$2 sm:$0xff] %v69
    %v74 = vld.sshfl [vmem:[#allocation1] sm:$0xff pattern:$0x75316420]
    %v75 = vld.sshfl [vmem:[#allocation1 + $0x8] sm:$0xff pattern:$0x75316420]
    %s76 = scalar_lea.vmem [#allocation1], 16
    %77 = vst [vmem:[%s76] ss:$2 sm:$0xff] %v70
    %v78 = vld.sshfl [vmem:[#allocation1 + $0x10] sm:$0xff pattern:$0x75316420]
    %v79 = vld.sshfl [vmem:[#allocation1 + $0x18] sm:$0xff pattern:$0x75316420]
    %v84 = vsel %vm55, %v74, 0.0
    %v85 = vsel %vm55, %v75, 0.0
    %v86 = vadd.f32 %v84, %v85
    %87 = vadd.xlane.f32.xlu0 %v86
    %v88 = vpop.xlane.xlu0 %87
    %v89 = vsel %vm55, %v78, 0.0
    %v90 = vsel %vm55, %v79, 0.0
    %v91 = vadd.f32 %v89, %v90
    %92 = vadd.xlane.f32.xlu0 %v91
    %v93 = vpop.xlane.xlu0 %92
    %v94 = vsel %vm55, %v88, 0.0
    %v95 = vsel %vm55, %v93, 0.0
    %v96 = vadd.f32 %v94, %v95
    %v97 = vmul.f32 %v68, 0.001953125
    %v98 = vmul.f32 %v96, 0.001953125
    %v99 = vmul.f32 %v97, %v97
    %v100 = vsub.f32 %v98, %v99
    %v101 = vmax.f32 %v100, 0.0
    %v102 = vadd.f32 %v101, 1e-05
    %v103 = vrsqrt.pop %v102
    %v104 = vmul.f32 %v103, %v102
    %v105 = vmul.f32 %v104, %v103
    %v106 = vmul.f32 0.5, %v105
    %v107 = vsub.f32 1.5, %v106
    %v108 = vmul.f32 %v103, %v107
    %vm109 = vweird.f32 %v102
    %vm110 = vweird.f32 %v103
    %vm111 = vmor %vm109, %vm110
    %v112 = vsel %vm111, %v103, %v108
    %v113 = vld [vmem:[%s1] sm:$0xf]
    %v114 = vmul.f32 %v113, %v112
    %v115 = vld [vmem:[%s2] sm:$0xf]
    %v116 = vmul.f32 %v97, %v114
    %v117 = vsub.f32 %v115, %v116
    %119 = vset.pattern.permute.xlu0 0
    %120 = vperm.xlu0 %119, %v114
    %v121 = vpop.permute.xlu0 %120
    %v123 = vunpack.c.l.s4 839922192
    %v124 = vunpack.c.0.s8 %v123
    %v125 = vperm.slane %v121, %v124
    %v127 = vmul.f32 %v40, %v125
    %v128 = vmul.f32 %v41, %v125
    %130 = vset.pattern.permute.xlu0 0
    %131 = vperm.xlu0 %130, %v117
    %v132 = vpop.permute.xlu0 %131
    %v134 = vunpack.c.l.s4 839922192
    %v135 = vunpack.c.0.s8 %v134
    %v136 = vperm.slane %v132, %v135
    %v138 = vadd.f32 %v127, %v136
    %v139 = vadd.f32 %v128, %v136
    %140 = vst [vmem:[#allocation5] sm:$0xff] %v138
    %141 = vst [vmem:[#allocation5 + $0x8] sm:$0xff] %v139
    %v142 = vld [vmem:[%s3] sm:$0xf]
    %v143 = vmul.f32 %v142, 0.9
    %v144 = vmul.f32 %v97, 0.1
    %v145 = vadd.f32 %v143, %v144
    %vm146 = vcmask 3072
    %147 = vst.msk [vmem:[%s6] sm:$0xf] %vm146, %v145
    %v148 = vld [vmem:[%s4] sm:$0xf]
    %v149 = vmul.f32 %v148, 0.9
    %v150 = vmul.f32 %v101, 0.1
    %v151 = vadd.f32 %v149, %v150
    %152 = vst.msk [vmem:[%s7] sm:$0xf] %vm146, %v151
    // Predicated region
    $region26: #{tpu_custom_call.1} parent=1 // pred_check
      _
    $region27: #{tpu_custom_call.1} parent=1 // pred_check_branch
      %154 = sbr.rel (0) target = $region29
    $region28: #{tpu_custom_call.1} parent=1 // pred_region
      %156 = vsyncadd [#allocation4], 0
      %s157 = sshll.u32 [#allocation5], 4
      %s158 = int_to_ptr.vmem [resolvable:$true] %s157
      %s159 = sshll.u32 %s5, 4
      %s160 = int_to_ptr.hbm [resolvable:$true] %s159
      %165 = dma.vmem_to_hbm [thread:$0]  %s158, 256, %s160, [#allocation4], 128, 128, 8
    $region29: #{tpu_custom_call.1} parent=1 // pred_fallthru
      _
    // Predicated region
    $region30: #{tpu_custom_call.1} parent=1 // pred_check
      _
    $region31: #{tpu_custom_call.1} parent=1 // pred_check_branch
      %167 = sbr.rel (0) target = $region33
    $region32: #{tpu_custom_call.1} parent=1 // pred_region
      _
    $region33: #{tpu_custom_call.1} parent=1 // pred_fallthru
      _
    // Predicated region
    $region34: #{tpu_custom_call.1} parent=1 // pred_check
      _
    $region35: #{tpu_custom_call.1} parent=1 // pred_check_branch
      %169 = sbr.rel (0) target = $region37
    $region36: #{tpu_custom_call.1} parent=1 // pred_region
      _
    $region37: #{tpu_custom_call.1} parent=1 // pred_fallthru
      _
    // Predicated region
    $region38: #{tpu_custom_call.1} parent=1 // pred_check
      _
    $region39: #{tpu_custom_call.1} parent=1 // pred_check_branch
      %171 = sbr.rel (0) target = $region41
    $region40: #{tpu_custom_call.1} parent=1 // pred_region
      %173 = dma.done [#allocation4], 256
    $region41: #{tpu_custom_call.1} parent=1 // pred_fallthru
      _
    // Predicated region
    $region42: #{tpu_custom_call.1} parent=1 // pred_check
      _
    $region43: #{tpu_custom_call.1} parent=1 // pred_check_branch
      %175 = sbr.rel (0) target = $region45
    $region44: #{tpu_custom_call.1} parent=1 // pred_region
      _
    $region45: #{tpu_custom_call.1} parent=1 // pred_fallthru
      _
    // Predicated region
    $region46: #{tpu_custom_call.1} parent=1 // pred_check
      _
    $region47: #{tpu_custom_call.1} parent=1 // pred_check_branch
      %177 = sbr.rel (0) target = $region49
    $region48: #{tpu_custom_call.1} parent=1 // pred_region
      _
    $region49: #{tpu_custom_call.1} parent=1 // pred_fallthru
      _
    %178 = vsyncpa [#allocation3], 1
    %179 = vsyncpa [#allocation4], 1

</llo_original>
